<compile_context>
chip_gen: v5e
topology: v5e:2x2
jax: 0.10.0
libtpu: 0.0.40
codegen_flags: <defaults>
</compile_context>

<pallas_src>
import functools

import jax
import jax.numpy as jnp
from jax.experimental import pallas as pl
from jax.experimental.pallas import tpu as pltpu

DEPTH = 8
LANES = 128
STATE_DTYPE = jnp.int8

# int8 min tile is (32, 128) on the last two dims -> row tiles are multiples of
# 32.  1024 rows keeps the double-buffered working set under ~12 MiB even with
# a float32 mask (fits every chip's default scoped VMEM).
DEFAULT_TILE_R = 1024
_MIN_TILE_R = 256


def _unmasked_kernel(scal_ref, sr_ref, x_ref, out_ref, cnt_ref, slot_ref, *, depth):
    """Plain shift, ring-buffer form.

    scal_ref : SMEM int32[2] = [head (ring slot being overwritten), out_slot]
    sr_ref   : (depth, tr, 128) int8  -- full register (ring order), read only
    x_ref    : (tr, 128) input bits, native dtype (cast in-kernel)
    out_ref  : (tr, 128) int8  -- sr[index] (pre-shift)
    cnt_ref  : (tr, 128) int8  -- popcount over slots (pre-shift)
    slot_ref : (1, tr, 128) int8 -- the single ring slot rewritten this step
               (aliased onto the sr HBM buffer; all other slots stay in place)
    """
    out_ref[...] = sr_ref[scal_ref[1]]                 # dynamic leading-axis read
    cnt = sr_ref[0].astype(jnp.int32)
    for i in range(1, depth):                          # fused single read pass
        cnt = cnt + sr_ref[i].astype(jnp.int32)
    cnt_ref[...] = cnt.astype(cnt_ref.dtype)
    slot_ref[0] = x_ref[...].astype(slot_ref.dtype)    # only slot that changes


def _masked_kernel(scal_ref, sr_ref, x_ref, m_ref, out_ref, cnt_ref, new_sr_ref, *,
                   depth):
    """Masked shift: new[i] = where(mask, old[i+1] (x at the end), old[i]).

    Reads the register in ring order (via head) and writes it back in canonical
    order (new head = 0).  scal_ref = [head, out_slot].
    """
    head = scal_ref[0]
    out_ref[...] = sr_ref[scal_ref[1]]
    m = m_ref[...] != 0                                # select, not arithmetic blend
    cnt = None
    prev = None                                        # old logical slot i-1
    for i in range(depth):
        cur = sr_ref[(head + i) % depth]               # old logical slot i
        c32 = cur.astype(jnp.int32)
        cnt = c32 if cnt is None else cnt + c32
        if i > 0:
            new_sr_ref[i - 1] = jnp.where(m, cur, prev)
        prev = cur
    new_sr_ref[depth - 1] = jnp.where(m, x_ref[...].astype(new_sr_ref.dtype), prev)
    cnt_ref[...] = cnt.astype(cnt_ref.dtype)


def init_state(input_shape, depth=DEPTH, dtype=STATE_DTYPE):
    """Replicates the lazy init in ShiftReg_forward: sr[i] = i % 2, head = 0."""
    total = 1
    for s in input_shape:
        total *= s
    assert total % LANES == 0, "flattened input must be a multiple of 128"
    rows = total // LANES
    pat = jnp.asarray([i % 2 for i in range(depth)], dtype=dtype)
    sr = jnp.broadcast_to(pat[:, None, None], (depth, rows, LANES))
    return sr, jnp.asarray(0, dtype=jnp.int32)


def sr_logical(sr, head):
    """Canonical [slot 0 .. depth-1] view of the ring-buffer state."""
    return jnp.roll(sr, -head, axis=0)


def _choose_tile_r(rows):
    if rows <= DEFAULT_TILE_R:
        return rows                              # single full-extent block (legal)
    # Prefer exact multiple-of-32 divisors (int8 min sublane tile) and >= 2 grid
    # steps so v7x's second TensorCore gets half of the rows.
    hi = min(DEFAULT_TILE_R, (rows // 2) // 32 * 32)
    for t in range(hi, _MIN_TILE_R - 1, -32):
        if rows % t == 0:
            return t
    # Awkward row count: keep a large tile; Pallas masks the partial last block.
    return max(hi, 32)


@functools.partial(jax.jit, static_argnames=("depth",), donate_argnums=(0,))
def shiftreg_forward(sr, head, x_nchw, mask_nchw=None, index=0, *, depth=DEPTH):
    """One functional ShiftReg step.

    sr:        (depth, R, 128) int8 ring-buffer state.  DONATED & aliased: it is
               updated in place in HBM; do not reuse the old buffer afterwards.
    head:      int32 scalar; logical slot 0 lives at sr[head].
    x_nchw:    unary bits (any numeric dtype, 0/1 values), e.g. (B, C, H, W).
    mask_nchw: optional enable mask (0/1 values), same element count as x.
    index:     logical slot to read out (wraps modulo depth).

    Returns (out, cnt, new_sr, new_head); out/cnt are int8 in x_nchw's shape.
    """
    assert sr.shape[0] == depth
    dtype = sr.dtype
    rows = sr.shape[1]
    in_shape = x_nchw.shape
    tile_r = _choose_tile_r(rows)
    grid = (pl.cdiv(rows, tile_r),)

    head = jnp.asarray(head, jnp.int32) % depth
    out_slot = (head + jnp.asarray(index, jnp.int32)) % depth
    scal = jnp.stack([head, out_slot])

    if x_nchw.dtype == jnp.bool_:
        x_nchw = x_nchw.astype(jnp.int8)
    x2d = x_nchw.reshape(rows, LANES)            # native dtype; cast in-kernel

    sr_spec = pl.BlockSpec((depth, tile_r, LANES), lambda i, s: (0, i, 0))
    row_spec = pl.BlockSpec((tile_r, LANES), lambda i, s: (i, 0))

    n = rows * LANES
    if mask_nchw is None:
        # Unmasked: only ring slot `head` changes -> write a single slot of the
        # aliased sr buffer; every other slot stays untouched in HBM.
        kernel = functools.partial(_unmasked_kernel, depth=depth)
        in_specs = [sr_spec, row_spec]
        operands = (scal, sr, x2d)
        new_sr_spec = pl.BlockSpec((1, tile_r, LANES), lambda i, s: (s[0], i, 0))
        new_head = (head + 1) % depth
        cost = pl.CostEstimate(
            flops=(depth + 1) * n, transcendentals=0,
            bytes_accessed=(depth + 3) * n + n * x2d.dtype.itemsize)
    else:
        m2d = mask_nchw
        if m2d.dtype == jnp.bool_:
            m2d = m2d.astype(jnp.int8)
        m2d = m2d.reshape(rows, LANES)           # native dtype; compared != 0 in-kernel
        kernel = functools.partial(_masked_kernel, depth=depth)
        in_specs = [sr_spec, row_spec, row_spec]
        operands = (scal, sr, x2d, m2d)
        new_sr_spec = sr_spec                    # full rewrite, canonical order
        new_head = jnp.zeros((), jnp.int32)
        cost = pl.CostEstimate(
            flops=(2 * depth + 2) * n, transcendentals=0,
            bytes_accessed=(2 * depth + 2) * n
            + n * (x2d.dtype.itemsize + m2d.dtype.itemsize))

    out2d, cnt2d, new_sr = pl.pallas_call(
        kernel,
        grid_spec=pltpu.PrefetchScalarGridSpec(
            num_scalar_prefetch=1,
            grid=grid,
            in_specs=in_specs,
            out_specs=[row_spec, row_spec, new_sr_spec],
        ),
        out_shape=(
            jax.ShapeDtypeStruct((rows, LANES), dtype),
            jax.ShapeDtypeStruct((rows, LANES), dtype),
            jax.ShapeDtypeStruct((depth, rows, LANES), dtype),
        ),
        # Operand 1 (sr; index counts the scalar-prefetch operand) aliases
        # output 2 (new_sr): the register is updated in place in HBM, and the
        # slots not written by the grid keep their old values.
        input_output_aliases={1: 2},
        compiler_params=pltpu.CompilerParams(
            dimension_semantics=("parallel",),
            vmem_limit_bytes=32 * 1024 * 1024),
        cost_estimate=cost,
    )(*operands)

    return out2d.reshape(in_shape), cnt2d.reshape(in_shape), new_sr, new_head


if __name__ == "__main__":
    key = jax.random.PRNGKey(0)
    B, C, H, W = 2, 4, 16, 16                    # 2*4*16*16 = 2048 = 16 rows x 128 lanes
    rows = (B * C * H * W) // LANES
    kx, km = jax.random.split(key)

    # unary bit inputs (0/1) and an enable mask (0/1), float32 like stype=torch.float
    x = jax.random.bernoulli(kx, 0.5, (B, C, H, W)).astype(jnp.float32)
    mask = jax.random.bernoulli(km, 0.7, (B, C, H, W)).astype(jnp.float32)

    sr, head = init_state((B, C, H, W))

    # step 1: plain shift (mask=None), index=0
    out1, cnt1, sr, head = shiftreg_forward(sr, head, x, None, 0)
    sr1_log = sr_logical(sr, head)               # canonical view (issued before donation)
    # step 2: masked shift, index=3
    out2, cnt2, sr, head = shiftreg_forward(sr, head, x, mask, 3)
    sr2_log = sr_logical(sr, head)
    jax.block_until_ready((out1, cnt1, out2, cnt2, sr1_log, sr2_log))

    # reference in plain JAX (canonical, float32)
    x2d = x.reshape(rows, LANES)
    m2d = mask.reshape(rows, LANES)
    sr_ref = jnp.broadcast_to(
        jnp.asarray([i % 2 for i in range(DEPTH)], jnp.float32)[:, None, None],
        (DEPTH, rows, LANES))

    def ref_step(srr, xx, mm, idx):
        o = srr[idx]
        c = jnp.sum(srr, axis=0)
        shifted = jnp.concatenate([srr[1:], xx[None]], axis=0)
        new = shifted if mm is None else jnp.where(mm != 0, shifted, srr)
        return o, c, new

    ro1, rc1, sr_ref = ref_step(sr_ref, x2d, None, 0)
    ref1 = sr_ref
    ro2, rc2, sr_ref = ref_step(sr_ref, x2d, m2d, 3)

    assert jnp.array_equal(out1.reshape(rows, LANES).astype(jnp.float32), ro1)
    assert jnp.array_equal(cnt1.reshape(rows, LANES).astype(jnp.float32), rc1)
    assert jnp.array_equal(out2.reshape(rows, LANES).astype(jnp.float32), ro2)
    assert jnp.array_equal(cnt2.reshape(rows, LANES).astype(jnp.float32), rc2)
    assert jnp.array_equal(sr1_log.astype(jnp.float32), ref1)
    assert jnp.array_equal(sr2_log.astype(jnp.float32), sr_ref)

    print("KERNEL_OK")
</pallas_src>

<mosaic_0001>
module attributes {stable_mosaic.version = 11 : i64} {
  func.func @_unmasked_kernel(%arg0: i32, %arg1: memref<2xi32, #tpu.memory_space<smem>>, %arg2: memref<8x16x128xi8, #tpu.memory_space<vmem>>, %arg3: memref<16x128xf32, #tpu.memory_space<vmem>>, %arg4: memref<16x128xi8, #tpu.memory_space<vmem>>, %arg5: memref<16x128xi8, #tpu.memory_space<vmem>>, %arg6: memref<1x16x128xi8, #tpu.memory_space<vmem>>) attributes {dimension_semantics = [#tpu.dimension_semantics<parallel>], iteration_bounds = array<i64: 1>, scalar_prefetch = 1 : i64, scratch_operands = 0 : i64, tpu.core_type = #tpu.core_type<tc>, window_params = [{transform_indices = @transform_0, window_bounds = array<i64: 8, 16, 128>}, {transform_indices = @transform_1, window_bounds = array<i64: 16, 128>}, {transform_indices = @transform_2, window_bounds = array<i64: 16, 128>}, {transform_indices = @transform_3, window_bounds = array<i64: 16, 128>}, {transform_indices = @transform_4, window_bounds = array<i64: 1, 16, 128>}]} {
    %c1 = arith.constant 1 : index
    %0 = memref.load %arg1[%c1] : memref<2xi32, #tpu.memory_space<smem>>
    %1 = arith.index_cast %0 : i32 to index
    %c0 = arith.constant 0 : index
    %c0_0 = arith.constant 0 : index
    %2 = vector.load %arg2[%1, %c0, %c0_0] : memref<8x16x128xi8, #tpu.memory_space<vmem>>, vector<1x16x128xi8>
    %3 = vector.shape_cast %2 : vector<1x16x128xi8> to vector<16x128xi8>
    %c0_1 = arith.constant 0 : index
    %c0_2 = arith.constant 0 : index
    %4 = vector.load %arg4[%c0_1, %c0_2] : memref<16x128xi8, #tpu.memory_space<vmem>>, vector<16x128xi8>
    tpu.vector_store %arg4[%c0_1, %c0_2], %3 {strides = array<i32>} : memref<16x128xi8, #tpu.memory_space<vmem>>, vector<16x128xi8>,
    %c0_3 = arith.constant 0 : index
    %c0_4 = arith.constant 0 : index
    %c0_5 = arith.constant 0 : index
    %5 = vector.load %arg2[%c0_3, %c0_4, %c0_5] : memref<8x16x128xi8, #tpu.memory_space<vmem>>, vector<1x16x128xi8>
    %6 = vector.shape_cast %5 : vector<1x16x128xi8> to vector<16x128xi8>
    %7 = arith.extsi %6 : vector<16x128xi8> to vector<16x128xi32>
    %c1_6 = arith.constant 1 : index
    %c0_7 = arith.constant 0 : index
    %c0_8 = arith.constant 0 : index
    %8 = vector.load %arg2[%c1_6, %c0_7, %c0_8] : memref<8x16x128xi8, #tpu.memory_space<vmem>>, vector<1x16x128xi8>
    %9 = vector.shape_cast %8 : vector<1x16x128xi8> to vector<16x128xi8>
    %10 = arith.extsi %9 : vector<16x128xi8> to vector<16x128xi32>
    %11 = arith.addi %7, %10 : vector<16x128xi32>
    %c2 = arith.constant 2 : index
    %c0_9 = arith.constant 0 : index
    %c0_10 = arith.constant 0 : index
    %12 = vector.load %arg2[%c2, %c0_9, %c0_10] : memref<8x16x128xi8, #tpu.memory_space<vmem>>, vector<1x16x128xi8>
    %13 = vector.shape_cast %12 : vector<1x16x128xi8> to vector<16x128xi8>
    %14 = arith.extsi %13 : vector<16x128xi8> to vector<16x128xi32>
    %15 = arith.addi %11, %14 : vector<16x128xi32>
    %c3 = arith.constant 3 : index
    %c0_11 = arith.constant 0 : index
    %c0_12 = arith.constant 0 : index
    %16 = vector.load %arg2[%c3, %c0_11, %c0_12] : memref<8x16x128xi8, #tpu.memory_space<vmem>>, vector<1x16x128xi8>
    %17 = vector.shape_cast %16 : vector<1x16x128xi8> to vector<16x128xi8>
    %18 = arith.extsi %17 : vector<16x128xi8> to vector<16x128xi32>
    %19 = arith.addi %15, %18 : vector<16x128xi32>
    %c4 = arith.constant 4 : index
    %c0_13 = arith.constant 0 : index
    %c0_14 = arith.constant 0 : index
    %20 = vector.load %arg2[%c4, %c0_13, %c0_14] : memref<8x16x128xi8, #tpu.memory_space<vmem>>, vector<1x16x128xi8>
    %21 = vector.shape_cast %20 : vector<1x16x128xi8> to vector<16x128xi8>
    %22 = arith.extsi %21 : vector<16x128xi8> to vector<16x128xi32>
    %23 = arith.addi %19, %22 : vector<16x128xi32>
    %c5 = arith.constant 5 : index
    %c0_15 = arith.constant 0 : index
    %c0_16 = arith.constant 0 : index
    %24 = vector.load %arg2[%c5, %c0_15, %c0_16] : memref<8x16x128xi8, #tpu.memory_space<vmem>>, vector<1x16x128xi8>
    %25 = vector.shape_cast %24 : vector<1x16x128xi8> to vector<16x128xi8>
    %26 = arith.extsi %25 : vector<16x128xi8> to vector<16x128xi32>
    %27 = arith.addi %23, %26 : vector<16x128xi32>
    %c6 = arith.constant 6 : index
    %c0_17 = arith.constant 0 : index
    %c0_18 = arith.constant 0 : index
    %28 = vector.load %arg2[%c6, %c0_17, %c0_18] : memref<8x16x128xi8, #tpu.memory_space<vmem>>, vector<1x16x128xi8>
    %29 = vector.shape_cast %28 : vector<1x16x128xi8> to vector<16x128xi8>
    %30 = arith.extsi %29 : vector<16x128xi8> to vector<16x128xi32>
    %31 = arith.addi %27, %30 : vector<16x128xi32>
    %c7 = arith.constant 7 : index
    %c0_19 = arith.constant 0 : index
    %c0_20 = arith.constant 0 : index
    %32 = vector.load %arg2[%c7, %c0_19, %c0_20] : memref<8x16x128xi8, #tpu.memory_space<vmem>>, vector<1x16x128xi8>
    %33 = vector.shape_cast %32 : vector<1x16x128xi8> to vector<16x128xi8>
    %34 = arith.extsi %33 : vector<16x128xi8> to vector<16x128xi32>
    %35 = arith.addi %31, %34 : vector<16x128xi32>
    %36 = arith.trunci %35 : vector<16x128xi32> to vector<16x128xi8>
    %c0_21 = arith.constant 0 : index
    %c0_22 = arith.constant 0 : index
    %37 = vector.load %arg5[%c0_21, %c0_22] : memref<16x128xi8, #tpu.memory_space<vmem>>, vector<16x128xi8>
    tpu.vector_store %arg5[%c0_21, %c0_22], %36 {strides = array<i32>} : memref<16x128xi8, #tpu.memory_space<vmem>>, vector<16x128xi8>,
    %c0_23 = arith.constant 0 : index
    %c0_24 = arith.constant 0 : index
    %38 = vector.load %arg3[%c0_23, %c0_24] : memref<16x128xf32, #tpu.memory_space<vmem>>, vector<16x128xf32>
    %39 = arith.fptosi %38 : vector<16x128xf32> to vector<16x128xi8>
    %c0_25 = arith.constant 0 : index
    %c0_26 = arith.constant 0 : index
    %c0_27 = arith.constant 0 : index
    %40 = vector.load %arg6[%c0_25, %c0_26, %c0_27] : memref<1x16x128xi8, #tpu.memory_space<vmem>>, vector<1x16x128xi8>
    %41 = vector.shape_cast %40 : vector<1x16x128xi8> to vector<16x128xi8>
    %42 = vector.shape_cast %39 : vector<16x128xi8> to vector<1x16x128xi8>
    tpu.vector_store %arg6[%c0_25, %c0_26, %c0_27], %42 {strides = array<i32>} : memref<1x16x128xi8, #tpu.memory_space<vmem>>, vector<1x16x128xi8>,
    return
  }
  func.func @transform_0(%arg0: i32, %arg1: memref<2xi32, #tpu.memory_space<smem>>) -> (i32, i32, i32) {
    %c0_i32 = arith.constant 0 : i32
    %c0_i32_0 = arith.constant 0 : i32
    %c0_i32_1 = arith.constant 0 : i32
    return %c0_i32, %arg0, %c0_i32_0 : i32, i32, i32
  }
  func.func @transform_1(%arg0: i32, %arg1: memref<2xi32, #tpu.memory_space<smem>>) -> (i32, i32) {
    %c0_i32 = arith.constant 0 : i32
    %c0_i32_0 = arith.constant 0 : i32
    return %arg0, %c0_i32 : i32, i32
  }
  func.func @transform_2(%arg0: i32, %arg1: memref<2xi32, #tpu.memory_space<smem>>) -> (i32, i32) {
    %c0_i32 = arith.constant 0 : i32
    %c0_i32_0 = arith.constant 0 : i32
    return %arg0, %c0_i32 : i32, i32
  }
  func.func @transform_3(%arg0: i32, %arg1: memref<2xi32, #tpu.memory_space<smem>>) -> (i32, i32) {
    %c0_i32 = arith.constant 0 : i32
    %c0_i32_0 = arith.constant 0 : i32
    return %arg0, %c0_i32 : i32, i32
  }
  func.func @transform_4(%arg0: i32, %arg1: memref<2xi32, #tpu.memory_space<smem>>) -> (i32, i32, i32) {
    %c0 = arith.constant 0 : index
    %0 = memref.load %arg1[%c0] : memref<2xi32, #tpu.memory_space<smem>>
    %c0_i32 = arith.constant 0 : i32
    %c0_i32_0 = arith.constant 0 : i32
    return %0, %arg0, %c0_i32 : i32, i32, i32
  }
}

</mosaic_0001>

<llo_original>
// kernel: shiftreg_forward.1
$region0: #{shiftreg_forward.1}
  #allocation0 [shape = 'u32[]', space=smem, size = 0x4, offset = 0x4, fixed_abs, tag = 'smem constant byte address 0x4 - core index']
  #allocation1 [shape = 'u32[72,128]{1,0:T(1,128)}', space=vmem, size = 0x9000, scoped, tag = 'internal scratch']
  #allocation2 [shape = 's32[1]{0}', space=sflag, size = 0x4, scoped, tag = 'scoped memory for shiftreg_forward.1']
  #allocation3 [shape = 'u8[512]{0}', space=smem, size = 0x200, scoped, tag = 'prefetched SMEM operand 0']
  %s0 = inlined_call_operand.vmem [shape: s32[2], index: 0, kind: input, shape index: {}]
  %s1 = inlined_call_operand.vmem [shape: s8[8,16,128], index: 1, kind: input, shape index: {}, may-alias: {1,5}]
  %s2 = inlined_call_operand.vmem [shape: f32[16,128], index: 2, kind: input, shape index: {}]
  %s3 = inlined_call_operand.vmem [shape: s8[16,128], index: 3, kind: output, shape index: {0}]
  %s4 = inlined_call_operand.vmem [shape: s8[16,128], index: 4, kind: output, shape index: {1}]
  %s5 = inlined_call_operand.vmem [shape: s8[8,16,128], index: 5, kind: output, shape index: {2}, may-alias: {1,5}]
  %6 = xla_tuple %s3, %s4, %s5
  %s7 = sld [smem:[#allocation0]]
  $region34: #{shiftreg_forward.1} parent=0
    _
  %s9 = ssub.s32 1, %s7
  %s10 = scalar_select 0, %s9, %s7
  %s12 = sshll.u32 %s0, 4
  %s13 = int_to_ptr.vmem [resolvable:$true] %s12
  %15 = dma.vmem_to_smem %s13, 16, [#allocation3], [#allocation2]
  %17 = dma.done [#allocation2], 16
  %18 = sfence
  // Predicated region
  $region2: #{shiftreg_forward.1} parent=0 // pred_check
    _
  $region3: #{shiftreg_forward.1} parent=0 // pred_check_branch
    %20 = sbr.rel (0) target = $region5
  $region4: #{shiftreg_forward.1} parent=0 // pred_region
    _
  $region5: #{shiftreg_forward.1} parent=0 // pred_fallthru
    _
  // Predicated region
  $region6: #{shiftreg_forward.1} parent=0 // pred_check
    _
  $region7: #{shiftreg_forward.1} parent=0 // pred_check_branch
    %22 = sbr.rel (0) target = $region9
  $region8: #{shiftreg_forward.1} parent=0 // pred_region
    _
  $region9: #{shiftreg_forward.1} parent=0 // pred_fallthru
    _
  %s23 = sld [smem:[#allocation3]]
  %p24 = scmp.lt.s32.totalorder %s23, 7
  %s25 = scalar_select %p24, %s23, 7
  %s26 = smul.addr %s25, 2
  %s27 = smul.addr %s26, 2
  %s28 = scalar_lea.vmem %s5, %s27
  %s29 = sld [smem:[#allocation3]]
  %p30 = scmp.lt.s32.totalorder %s29, 7
  %s31 = scalar_select %p30, %s29, 7
  %s32 = smul.addr %s31, 2
  %s33 = smul.addr %s32, 2
  %s34 = scalar_lea.vmem %s5, %s33
  %s35 = sld [smem:[#allocation3]]
  %s36 = sld [smem:[#allocation3 + $0x1]]
  %s37 = smul.u32 %s36, 2
  %s38 = smul.addr %s37, 2
  %s39 = scalar_lea.vmem %s1, %s38
  %v40 = vld [vmem:[%s39] sm:$0x3]
  %v41 = vld [vmem:[%s39 + $0x2] sm:$0x3]
  %42 = vst [vmem:[%s3] sm:$0x3] %v40
  %43 = vst [vmem:[%s3 + $0x2] sm:$0x3] %v41
  %v44 = vld [vmem:[%s1] sm:$0x3]
  %v45 = vld [vmem:[%s1 + $0x2] sm:$0x3]
  %v46 = vunpack.c.0.s8 %v44
  %v47 = vunpack.c.0.s8 %v45
  %s48 = scalar_lea.vmem %s1, 4
  %v49 = vld [vmem:[%s48] sm:$0x3]
  %v50 = vld [vmem:[%s48 + $0x2] sm:$0x3]
  %v51 = vunpack.c.0.s8 %v49
  %v52 = vunpack.c.0.s8 %v50
  %v53 = vadd.s32 %v46, %v51
  %v54 = vadd.s32 %v47, %v52
  %s55 = scalar_lea.vmem %s1, 8
  %v56 = vld [vmem:[%s55] sm:$0x3]
  %v57 = vld [vmem:[%s55 + $0x2] sm:$0x3]
  %v58 = vunpack.c.0.s8 %v56
  %v59 = vunpack.c.0.s8 %v57
  %v60 = vadd.s32 %v53, %v58
  %v61 = vadd.s32 %v54, %v59
  %s62 = scalar_lea.vmem %s1, 12
  %v63 = vld [vmem:[%s62] sm:$0x3]
  %v64 = vld [vmem:[%s62 + $0x2] sm:$0x3]
  %v65 = vunpack.c.0.s8 %v63
  %v66 = vunpack.c.0.s8 %v64
  %v67 = vadd.s32 %v60, %v65
  %v68 = vadd.s32 %v61, %v66
  %s69 = scalar_lea.vmem %s1, 16
  %v70 = vld [vmem:[%s69] sm:$0x3]
  %v71 = vld [vmem:[%s69 + $0x2] sm:$0x3]
  %v72 = vunpack.c.0.s8 %v70
  %v73 = vunpack.c.0.s8 %v71
  %v74 = vadd.s32 %v67, %v72
  %v75 = vadd.s32 %v68, %v73
  %s76 = scalar_lea.vmem %s1, 20
  %v77 = vld [vmem:[%s76] sm:$0x3]
  %v78 = vld [vmem:[%s76 + $0x2] sm:$0x3]
  %v79 = vunpack.c.0.s8 %v77
  %v80 = vunpack.c.0.s8 %v78
  %v81 = vadd.s32 %v74, %v79
  %v82 = vadd.s32 %v75, %v80
  %s83 = scalar_lea.vmem %s1, 24
  %v84 = vld [vmem:[%s83] sm:$0x3]
  %v85 = vld [vmem:[%s83 + $0x2] sm:$0x3]
  %v86 = vunpack.c.0.s8 %v84
  %v87 = vunpack.c.0.s8 %v85
  %v88 = vadd.s32 %v81, %v86
  %v89 = vadd.s32 %v82, %v87
  %s90 = scalar_lea.vmem %s1, 28
  %v91 = vld [vmem:[%s90] sm:$0x3]
  %v92 = vld [vmem:[%s90 + $0x2] sm:$0x3]
  %v93 = vunpack.c.0.s8 %v91
  %v94 = vunpack.c.0.s8 %v92
  %v95 = vadd.s32 %v88, %v93
  %v96 = vadd.s32 %v89, %v94
  %v97 = vpack.c.b16 %v95, %v95
  %v98 = vpack.c.b8 %v97, %v97
  %v99 = vpack.c.b16 %v96, %v96
  %v100 = vpack.c.b8 %v99, %v99
  %101 = vst [vmem:[%s4] sm:$0x3] %v98
  %102 = vst [vmem:[%s4 + $0x2] sm:$0x3] %v100
  %v103 = vld [vmem:[%s2] sm:$0xff]
  %v104 = vld [vmem:[%s2 + $0x8] sm:$0xff]
  %v105 = vmax.f32 %v103, -128.0
  %v106 = vmax.f32 %v104, -128.0
  %v107 = vmin.f32 %v105, 127.0
  %v108 = vmin.f32 %v106, 127.0
  %v109 = vcvt.f32.s32.to.zero.pseudo %v107
  %v110 = vcvt.f32.s32.to.zero.pseudo %v108
  %v111 = vpack.c.b16 %v109, %v109
  %v112 = vpack.c.b8 %v111, %v111
  %v113 = vpack.c.b16 %v110, %v110
  %v114 = vpack.c.b8 %v113, %v113
  %115 = vst [vmem:[%s34] sm:$0x3] %v112
  %116 = vst [vmem:[%s34 + $0x2] sm:$0x3] %v114
  %s117 = sld [smem:[#allocation3]]
  %p118 = scmp.lt.s32.totalorder %s117, 7
  %s119 = scalar_select %p118, %s117, 7
  %s120 = smul.addr %s119, 2
  %s121 = smul.addr %s120, 2
  %s122 = scalar_lea.vmem %s5, %s121
  // Predicated region
  $region10: #{shiftreg_forward.1} parent=0 // pred_check
    _
  $region11: #{shiftreg_forward.1} parent=0 // pred_check_branch
    %124 = sbr.rel (0) target = $region13
  $region12: #{shiftreg_forward.1} parent=0 // pred_region
    _
  $region13: #{shiftreg_forward.1} parent=0 // pred_fallthru
    _
  // Predicated region
  $region14: #{shiftreg_forward.1} parent=0 // pred_check
    _
  $region15: #{shiftreg_forward.1} parent=0 // pred_check_branch
    %126 = sbr.rel (0) target = $region17
  $region16: #{shiftreg_forward.1} parent=0 // pred_region
    _
  $region17: #{shiftreg_forward.1} parent=0 // pred_fallthru
    _
  // Predicated region
  $region18: #{shiftreg_forward.1} parent=0 // pred_check
    _
  $region19: #{shiftreg_forward.1} parent=0 // pred_check_branch
    %128 = sbr.rel (0) target = $region21
  $region20: #{shiftreg_forward.1} parent=0 // pred_region
    %s129 = sld [smem:[#allocation3]]
  $region21: #{shiftreg_forward.1} parent=0 // pred_fallthru
    _
  // Predicated region
  $region22: #{shiftreg_forward.1} parent=0 // pred_check
    _
  $region23: #{shiftreg_forward.1} parent=0 // pred_check_branch
    %131 = sbr.rel (0) target = $region25
  $region24: #{shiftreg_forward.1} parent=0 // pred_region
    _
  $region25: #{shiftreg_forward.1} parent=0 // pred_fallthru
    _
  // Predicated region
  $region26: #{shiftreg_forward.1} parent=0 // pred_check
    _
  $region27: #{shiftreg_forward.1} parent=0 // pred_check_branch
    %133 = sbr.rel (0) target = $region29
  $region28: #{shiftreg_forward.1} parent=0 // pred_region
    _
  $region29: #{shiftreg_forward.1} parent=0 // pred_fallthru
    _
  // Predicated region
  $region30: #{shiftreg_forward.1} parent=0 // pred_check
    _
  $region31: #{shiftreg_forward.1} parent=0 // pred_check_branch
    %135 = sbr.rel (0) target = $region33
  $region32: #{shiftreg_forward.1} parent=0 // pred_region
    %s136 = sld [smem:[#allocation3]]
    %p137 = scmp.lt.s32.totalorder %s136, 7
    %s138 = scalar_select %p137, %s136, 7
    %s139 = smul.addr %s138, 2
    %s140 = smul.addr %s139, 2
    %s141 = scalar_lea.vmem %s5, %s140
  $region33: #{shiftreg_forward.1} parent=0 // pred_fallthru
    _

</llo_original>
